<compile_context>
chip_gen: v7x
topology: tpu7x:2x2x1
jax: 0.10.0
libtpu: 0.0.40
codegen_flags: <defaults>
</compile_context>

<pallas_src>
from functools import partial

import jax
import jax.numpy as jnp
from jax.experimental import pallas as pl
from jax.experimental.pallas import tpu as pltpu


_LANE = 128
_COL_CANDIDATES = (4096, 2048, 1024, 512, 256, 128)
_SMALL_BYTES = 1 << 20          # below this, fused jnp clamp beats a pallas_call


def _chip_config():
    """Per-generation tile size, VMEM limit and megacore strategy."""
    kind = ""
    try:
        kind = jax.devices()[0].device_kind.lower()
    except Exception:
        pass
    if "v7" in kind:
        # 64 MiB physical VMEM, 3.2 TB/s HBM, 2 TensorCores per chip.
        return {"tile_bytes": 8 << 20, "vmem_limit_bytes": 48 << 20,
                "core_parallel": True}
    if "v6" in kind:
        # 128 MiB VMEM: 8 MiB tiles are trivially safe (small win over 4 MiB).
        return {"tile_bytes": 8 << 20, "vmem_limit_bytes": 64 << 20,
                "core_parallel": False}
    # v5e / unknown: 4 MiB tile, override the 16 MiB scoped-VMEM default.
    return {"tile_bytes": 4 << 20, "vmem_limit_bytes": 32 << 20,
            "core_parallel": False}


def _clamp_kernel(x_ref, o_ref, *, min_val, max_val):
    x = x_ref[...]
    # Bounds materialized in the input dtype: native-width vmax/vmin, no
    # promotion (critical for int / sub-32-bit inputs).
    lo = jnp.asarray(min_val, dtype=x.dtype)
    hi = jnp.asarray(max_val, dtype=x.dtype)
    o_ref[...] = jnp.minimum(jnp.maximum(x, lo), hi)


def _clamp_jnp(x, min_val, max_val):
    """dtype-preserving reference clamp (small-tensor bypass + ragged tail)."""
    lo = jnp.asarray(min_val, dtype=x.dtype)
    hi = jnp.asarray(max_val, dtype=x.dtype)
    return jnp.minimum(jnp.maximum(x, lo), hi)


def _clamp_2d_pallas(x2d, min_val, max_val, block_rows, cfg):
    rows, cols = x2d.shape
    dtype = x2d.dtype
    nbytes = rows * cols * dtype.itemsize
    n_blocks = pl.cdiv(rows, block_rows)
    kernel = partial(_clamp_kernel, min_val=min_val, max_val=max_val)

    def run(sem):
        return pl.pallas_call(
            kernel,
            out_shape=jax.ShapeDtypeStruct((rows, cols), dtype),
            grid=(n_blocks,),
            in_specs=[pl.BlockSpec((block_rows, cols), lambda i: (i, 0))],
            out_specs=pl.BlockSpec((block_rows, cols), lambda i: (i, 0)),
            # Elementwise: output may reuse the input HBM buffer (true in-place
            # only when the input is donated / a dead intermediate under jit).
            input_output_aliases={0: 0},
            cost_estimate=pl.CostEstimate(
                flops=2 * rows * cols,          # one max + one min per element
                transcendentals=0,
                bytes_accessed=2 * nbytes),     # read N + write N
            compiler_params=pltpu.CompilerParams(
                dimension_semantics=(sem,),
                vmem_limit_bytes=cfg["vmem_limit_bytes"]),
        )(x2d)

    if cfg["core_parallel"] and n_blocks >= 2:
        try:
            # Shard row tiles across both TensorCores on v7x.
            return run(pltpu.CORE_PARALLEL)
        except Exception:
            pass  # compiler rejected core-parallel for this shape; fall back
    return run("parallel")


def clamp_pallas(x, min_val=0.0, max_val=1.0, *, force_pallas=False):
    """Elementwise clamp of a tensor via a Pallas TPU kernel.

    min_val / max_val must be Python scalars (compile-time constants).
    """
    dtype = x.dtype
    n = x.size
    if n == 0:
        return x
    itemsize = dtype.itemsize

    if not force_pallas and n * itemsize < _SMALL_BYTES:
        # Tiny tensors: a standalone pallas_call forces a full HBM round trip
        # plus launch overhead; the jnp clamp fuses into the producer for free.
        return _clamp_jnp(x, min_val, max_val)

    cfg = _chip_config()
    x_flat = jnp.reshape(x, (-1,))

    # Split into a lane-dense prefix (Pallas) + a tiny ragged tail (jnp clamp).
    if n % _LANE == 0:
        n_head, tail = n, 0
    else:
        n_head = (n // 1024) * 1024
        tail = n - n_head
    if n_head == 0:
        return _clamp_jnp(x, min_val, max_val)

    head = x_flat[:n_head] if tail else x_flat

    # Widest lane-dense column count that divides the prefix (reshape of a
    # contiguous array is free -> no pad copy on the common NCHW path).
    cols = next(c for c in _COL_CANDIDATES if n_head % c == 0)
    rows = n_head // cols

    # Sublane multiple: 8 for f32, 16 for bf16, 32 for int8/fp8.
    sublane = max(8, 32 // itemsize)
    desired_rows = max(
        sublane,
        (cfg["tile_bytes"] // (cols * itemsize)) // sublane * sublane,
    )
    if rows <= sublane:
        block_rows = rows  # full-extent block (valid even if not 8-aligned)
    else:
        block_rows = min(desired_rows, (rows // sublane) * sublane)

    x2d = jnp.reshape(head, (rows, cols))
    out_head = jnp.reshape(
        _clamp_2d_pallas(x2d, min_val, max_val, block_rows, cfg), (-1,))

    if tail:
        out_tail = _clamp_jnp(x_flat[n_head:], min_val, max_val)
        out_flat = jnp.concatenate([out_head, out_tail])
    else:
        out_flat = out_head
    return jnp.reshape(out_flat, x.shape)


class ClampModule:
    """JAX mirror of the PyTorch Clamp module."""

    def __init__(self, min=0.0, max=0.95):
        self.min = min
        self.max = max  # stored but unused, exactly like the PyTorch forward

    def __call__(self, x):
        # The reference forward hard-codes max=1.0 (NOT self.max).
        return clamp_pallas(x, min_val=self.min, max_val=1.0)


if __name__ == "__main__":
    key = jax.random.PRNGKey(0)
    # Small NCHW input consistent with a CIFAR10 VGG activation tensor.
    x = jax.random.normal(key, (2, 4, 16, 16), dtype=jnp.float32) * 2.0
    ref = jnp.clip(x, 0.0, 1.0)

    mod = ClampModule(min=0.0, max=0.95)

    # Force the Pallas path (production dispatch routes tiny tensors to the
    # fused jnp clamp) so the kernel itself is exercised and verified.
    out = jax.block_until_ready(
        clamp_pallas(x, min_val=mod.min, max_val=1.0, force_pallas=True))
    assert out.shape == x.shape and out.dtype == x.dtype
    assert bool(jnp.allclose(out, ref)), "mismatch vs reference clamp (forced)"

    # Module-level dispatch (small tensor -> fused fast path).
    out_fast = jax.block_until_ready(mod(x))
    assert bool(jnp.allclose(out_fast, ref)), "mismatch vs reference clamp (fast path)"

    # Larger slab -> automatic Pallas path with a big lane-dense tile.
    x2 = jax.random.normal(jax.random.PRNGKey(1), (8, 64, 32, 32),
                           dtype=jnp.float32) * 2.0
    ref2 = jnp.clip(x2, 0.0, 1.0)
    out2 = jax.block_until_ready(clamp_pallas(x2, 0.0, 1.0))
    assert bool(jnp.allclose(out2, ref2)), "mismatch vs reference clamp (large)"

    # Ragged (n % 128 != 0): aligned prefix via Pallas, <1024-elem tail via jnp.
    x3 = jax.random.normal(jax.random.PRNGKey(2), (3, 5, 7, 13),
                           dtype=jnp.float32) * 2.0
    ref3 = jnp.clip(x3, 0.0, 1.0)
    out3 = jax.block_until_ready(clamp_pallas(x3, 0.0, 1.0, force_pallas=True))
    assert bool(jnp.allclose(out3, ref3)), "mismatch vs reference clamp (ragged)"

    # Integer dtype: bounds are applied in-dtype (no f32 promotion / store error).
    xi = jax.random.randint(jax.random.PRNGKey(3), (2, 4, 16, 16), -3, 4,
                            dtype=jnp.int32)
    refi = jnp.clip(xi, 0, 1)
    outi = jax.block_until_ready(clamp_pallas(xi, 0, 1, force_pallas=True))
    assert outi.dtype == xi.dtype
    assert bool(jnp.array_equal(outi, refi)), "mismatch vs reference clamp (int32)"

    print("KERNEL_OK")
</pallas_src>

<mosaic_0001>
module attributes {stable_mosaic.version = 11 : i64} {
  func.func @_clamp_kernel(%arg0: i32, %arg1: memref<1x2048xf32, #tpu.memory_space<vmem>>, %arg2: memref<1x2048xf32, #tpu.memory_space<vmem>>) attributes {dimension_semantics = [#tpu.dimension_semantics<parallel>], iteration_bounds = array<i64: 1>, scalar_prefetch = 0 : i64, scratch_operands = 0 : i64, tpu.core_type = #tpu.core_type<tc>, window_params = [{transform_indices = @transform_0, window_bounds = array<i64: 1, 2048>}, {transform_indices = @transform_1, window_bounds = array<i64: 1, 2048>}]} {
    %c0 = arith.constant 0 : index
    %c0_0 = arith.constant 0 : index
    %0 = vector.load %arg1[%c0, %c0_0] : memref<1x2048xf32, #tpu.memory_space<vmem>>, vector<1x2048xf32>
    %cst = arith.constant 0.000000e+00 : f32
    %1 = vector.broadcast %cst : f32 to vector<1x2048xf32>
    %2 = arith.maximumf %0, %1 : vector<1x2048xf32>
    %cst_1 = arith.constant 1.000000e+00 : f32
    %3 = vector.broadcast %cst_1 : f32 to vector<1x2048xf32>
    %4 = arith.minimumf %2, %3 : vector<1x2048xf32>
    %c0_2 = arith.constant 0 : index
    %c0_3 = arith.constant 0 : index
    %5 = vector.load %arg2[%c0_2, %c0_3] : memref<1x2048xf32, #tpu.memory_space<vmem>>, vector<1x2048xf32>
    tpu.vector_store %arg2[%c0_2, %c0_3], %4 {strides = array<i32>} : memref<1x2048xf32, #tpu.memory_space<vmem>>, vector<1x2048xf32>,
    return
  }
  func.func @transform_0(%arg0: i32) -> (i32, i32) {
    %c0_i32 = arith.constant 0 : i32
    %c0_i32_0 = arith.constant 0 : i32
    return %arg0, %c0_i32 : i32, i32
  }
  func.func @transform_1(%arg0: i32) -> (i32, i32) {
    %c0_i32 = arith.constant 0 : i32
    %c0_i32_0 = arith.constant 0 : i32
    return %arg0, %c0_i32 : i32, i32
  }
}

</mosaic_0001>

<llo_original>
// kernel: tpu_custom_call.1
$region0: #{tpu_custom_call.1}
  #allocation0 [shape = 'u32[]', space=smem, size = 0x4, offset = 0x4, fixed_abs, tag = 'smem constant byte address 0x4 - core index']
  #allocation1 [shape = 'u32[144,128]{1,0:T(1,128)}', space=vmem, size = 0x12000, scoped, tag = 'internal scratch']
  %s0 = inlined_call_operand.hbm [shape: f32[1,2048], index: 0, kind: input, shape index: {}, may-alias: {0,1}]
  %s1 = inlined_call_operand.hbm [shape: f32[1,2048], index: 1, kind: output, shape index: {}, may-alias: {0,1}]
  %s2 = sld [smem:[#allocation0]]
  $region18: #{tpu_custom_call.1} parent=0
    _
  %s4 = ssub.s32 1, %s2
  %s5 = scalar_select 0, %s4, %s2
  $region1: #{tpu_custom_call.1} parent=0
    #allocation2 [shape = 'u8[8192]{0}', space=vmem, size = 0x2000, scoped, tag = 'input window, operand 0, single buffered']
    #allocation3 [shape = 's32[1]{0}', space=sflag, size = 0x4, scoped, tag = 'scoped memory for tpu_custom_call.1']
    #allocation4 [shape = 's32[1]{0}', space=sflag, size = 0x4, scoped, tag = 'scoped memory for tpu_custom_call.1']
    #allocation5 [shape = 'u8[8192]{0}', space=vmem, size = 0x2000, scoped, tag = 'output window, operand 0, single buffered']
    %6 = vsyncpa [#allocation3], 0
    %7 = vsyncpa [#allocation4], 0
    // Predicated region
    $region2: #{tpu_custom_call.1} parent=1 // pred_check
      _
    $region3: #{tpu_custom_call.1} parent=1 // pred_check_branch
      %9 = sbr.rel (0) target = $region5
    $region4: #{tpu_custom_call.1} parent=1 // pred_region
      %s11 = ssub.s32 256, 256
      %12 = vsyncadd [#allocation3], %s11
      %s14 = sshll.u32 [#allocation2], 4
      %s15 = int_to_ptr.vmem [resolvable:$true] %s14
      %17 = dma.hbm_to_vmem [thread:$0]  %s0, 256, %s15, [#allocation3]
    $region5: #{tpu_custom_call.1} parent=1 // pred_fallthru
      _
    // Predicated region
    $region6: #{tpu_custom_call.1} parent=1 // pred_check
      _
    $region7: #{tpu_custom_call.1} parent=1 // pred_check_branch
      %19 = sbr.rel (0) target = $region9
    $region8: #{tpu_custom_call.1} parent=1 // pred_region
      %20 = dma.done [#allocation3], 256
    $region9: #{tpu_custom_call.1} parent=1 // pred_fallthru
      _
    %v21 = vld [vmem:[#allocation2] sm:$0xff]
    %v22 = vld [vmem:[#allocation2 + $0x8] sm:$0xff]
    %v23 = vmax.f32 %v21, 0.0
    %v24 = vmax.f32 %v22, 0.0
    %v25 = vmin.f32 %v23, 1.0
    %v26 = vmin.f32 %v24, 1.0
    %27 = vst [vmem:[#allocation5] sm:$0xff] %v25
    %28 = vst [vmem:[#allocation5 + $0x8] sm:$0xff] %v26
    // Predicated region
    $region10: #{tpu_custom_call.1} parent=1 // pred_check
      _
    $region11: #{tpu_custom_call.1} parent=1 // pred_check_branch
      %30 = sbr.rel (0) target = $region13
    $region12: #{tpu_custom_call.1} parent=1 // pred_region
      %s32 = ssub.s32 256, 256
      %33 = vsyncadd [#allocation4], %s32
      %s35 = sshll.u32 [#allocation5], 4
      %s36 = int_to_ptr.vmem [resolvable:$true] %s35
      %38 = dma.vmem_to_hbm [thread:$0]  %s36, 256, %s1, [#allocation4]
    $region13: #{tpu_custom_call.1} parent=1 // pred_fallthru
      _
    // Predicated region
    $region14: #{tpu_custom_call.1} parent=1 // pred_check
      _
    $region15: #{tpu_custom_call.1} parent=1 // pred_check_branch
      %40 = sbr.rel (0) target = $region17
    $region16: #{tpu_custom_call.1} parent=1 // pred_region
      %41 = dma.done [#allocation4], 256
    $region17: #{tpu_custom_call.1} parent=1 // pred_fallthru
      _
    %42 = vsyncpa [#allocation3], 1
    %43 = vsyncpa [#allocation4], 1

</llo_original>
